<compile_context>
chip_gen: v5e
topology: v5e:2x2
jax: 0.10.0
libtpu: 0.0.40
codegen_flags: <defaults>
</compile_context>

<pallas_src>
import functools
import math

import jax
import jax.numpy as jnp
from jax import lax
from jax.experimental import pallas as pl
from jax.experimental.pallas import tpu as pltpu

EPS = 1e-5  # nn.LayerNorm default eps


def _attention_kernel(x_ref, g_ref, b_ref, wqkv_ref, wo_ref, bo_ref, o_ref,
                      *, bt, heads, dim_head):
    # x_ref: (Bt, N, D) tile (Bt batch elements); params are grid-invariant blocks.
    bt_, N, D = x_ref.shape
    rows = bt * N
    inner = heads * dim_head

    x = x_ref[...].reshape(rows, D).astype(jnp.float32)   # (rows, D)

    # ---- LayerNorm (fp32 statistics, biased variance like torch.nn.LayerNorm)
    mean = jnp.mean(x, axis=-1, keepdims=True)
    var = jnp.mean((x - mean) ** 2, axis=-1, keepdims=True)
    xn = (x - mean) * lax.rsqrt(var + EPS) * g_ref[...] + b_ref[...]

    # ---- QKV projection (bias-free); softmax scale is pre-folded into the Q
    # columns of wqkv, so no in-kernel scale pass.  bf16 operands, fp32 acc.
    qkv = jnp.dot(xn.astype(jnp.bfloat16), wqkv_ref[...],
                  preferred_element_type=jnp.float32)      # (rows, 3*inner) fp32

    # Lane-aligned (multiple-of-128) slab slices, cast to bf16 once.
    q_all = qkv[:, 0:inner].astype(jnp.bfloat16)
    k_all = qkv[:, inner:2 * inner].astype(jnp.bfloat16)
    v_all = qkv[:, 2 * inner:3 * inner].astype(jnp.bfloat16)

    # ---- Per-(batch, head) attention with deferred softmax normalization.
    batch_outs = []
    for bi in range(bt):                                   # static unroll, Bt small
        r0 = bi * N
        head_outs = []
        for h in range(heads):                             # static unroll, heads small
            lo = h * dim_head
            q = q_all[r0:r0 + N, lo:lo + dim_head]         # (N, dh) bf16
            k = k_all[r0:r0 + N, lo:lo + dim_head]
            v = v_all[r0:r0 + N, lo:lo + dim_head]

            # dots = (q*scale) @ k^T : contract head dims -> no transpose copy.
            dots = lax.dot_general(q, k, (((1,), (1,)), ((), ())),
                                   preferred_element_type=jnp.float32)  # (N, N) fp32

            # Numerically-stable softmax numerator only (normalize after A@V).
            dots = dots - jnp.max(dots, axis=-1, keepdims=True)
            p = jnp.exp(dots)
            s = jnp.sum(p, axis=-1, keepdims=True)          # (N, 1) fp32
            # Dropout(p=0.0) on attn -> identity.

            o_h = jnp.dot(p.astype(jnp.bfloat16), v,
                          preferred_element_type=jnp.float32)           # (N, dh)
            o_h = o_h * pl.reciprocal(s, approx=True)       # deferred normalization
            head_outs.append(o_h.astype(jnp.bfloat16))

        batch_outs.append(jnp.concatenate(head_outs, axis=-1))          # (N, inner)

    merged = batch_outs[0] if bt == 1 else jnp.concatenate(batch_outs, axis=0)

    # ---- Single K=inner output projection GEMM + bias for the whole tile.
    y = jnp.dot(merged, wo_ref[...], preferred_element_type=jnp.float32) + bo_ref[...]
    # Dropout(p=0.0) after the projection -> identity.
    o_ref[...] = y.reshape(bt, N, D).astype(o_ref.dtype)


def _pick_batch_tile(B, N, max_rows=512):
    """Largest divisor Bt of B with >= 2 grid steps (when B >= 2) and Bt*N <= max_rows."""
    best = 1
    for bt in range(1, B + 1):
        if B % bt:
            continue
        if B >= 2 and B // bt < 2:
            continue
        if bt * N > max_rows:
            continue
        best = bt
    return best


@functools.partial(jax.jit, static_argnames=("heads", "dim_head"))
def attention(x, gamma, beta, w_qkv, w_out, b_out, *, heads, dim_head):
    """x: (B, N, D) float32.  Returns (B, N, D)."""
    B, N, D = x.shape
    inner = heads * dim_head
    scale = dim_head ** (-0.5)
    bt = _pick_batch_tile(B, N)

    # Fold the softmax scale into the Q columns of the QKV weight (host side).
    w_qkv_scaled = w_qkv.at[:, :inner].multiply(scale)

    # bf16 weights: half the VMEM residency / HBM traffic; MXU accumulates in fp32.
    wqkv_bf = w_qkv_scaled.astype(jnp.bfloat16)
    wo_bf = w_out.astype(jnp.bfloat16)

    kernel = functools.partial(_attention_kernel,
                               bt=bt, heads=heads, dim_head=dim_head)

    flops = B * (2 * N * D * 3 * inner             # qkv projection
                 + heads * (4 * N * N * dim_head)  # q@k^T and p@v
                 + 2 * N * inner * D)              # output projection
    bytes_accessed = (x.size * 4 + B * N * D * 4
                      + wqkv_bf.size * 2 + wo_bf.size * 2
                      + (gamma.size + beta.size + b_out.size) * 4)
    cost = pl.CostEstimate(flops=flops,
                           transcendentals=B * heads * N * N,
                           bytes_accessed=bytes_accessed)

    # Rough per-step VMEM need (double-buffered tiles + weights + working set);
    # bump the scoped limit but stay safely under v7x's 64 MiB physical VMEM.
    rows = bt * N
    vmem_need = (2 * 2 * rows * D * 4                       # x + out tiles, 2-buffered
                 + 2 * (wqkv_bf.size * 2 + wo_bf.size * 2)  # bf16 weights, 2-buffered
                 + 6 * rows * 3 * inner * 4)                # qkv + temporaries (rough)
    vmem_limit = int(min(max(32 * 1024 * 1024, 2 * vmem_need), 56 * 1024 * 1024))

    out = pl.pallas_call(
        kernel,
        out_shape=jax.ShapeDtypeStruct((B, N, D), x.dtype),
        grid_spec=pltpu.PrefetchScalarGridSpec(
            num_scalar_prefetch=0,
            grid=(B // bt,),
            in_specs=[
                pl.BlockSpec((bt, N, D), lambda b: (b, 0, 0)),    # x (Bt batch elements)
                pl.BlockSpec((1, D), lambda b: (0, 0)),           # gamma
                pl.BlockSpec((1, D), lambda b: (0, 0)),           # beta
                pl.BlockSpec((D, 3 * inner), lambda b: (0, 0)),   # w_qkv (bf16, Q pre-scaled)
                pl.BlockSpec((inner, D), lambda b: (0, 0)),       # w_out (bf16)
                pl.BlockSpec((1, D), lambda b: (0, 0)),           # b_out
            ],
            out_specs=pl.BlockSpec((bt, N, D), lambda b: (b, 0, 0)),
        ),
        compiler_params=pltpu.CompilerParams(
            dimension_semantics=("parallel",),
            vmem_limit_bytes=vmem_limit,
        ),
        cost_estimate=cost,
    )(x, gamma.reshape(1, D), beta.reshape(1, D), wqkv_bf, wo_bf,
      b_out.reshape(1, D))
    return out


def _reference(x, gamma, beta, w_qkv, w_out, b_out, heads, dim_head):
    """Pure-JAX fp32 reference matching the PyTorch Attention forward."""
    B, N, _ = x.shape
    inner = heads * dim_head
    mean = jnp.mean(x, axis=-1, keepdims=True)
    var = jnp.mean((x - mean) ** 2, axis=-1, keepdims=True)
    xn = (x - mean) * lax.rsqrt(var + EPS) * gamma + beta
    qkv = xn @ w_qkv
    q, k, v = jnp.split(qkv, 3, axis=-1)

    def split_heads(t):
        return t.reshape(B, N, heads, dim_head).transpose(0, 2, 1, 3)

    q, k, v = split_heads(q), split_heads(k), split_heads(v)
    dots = jnp.einsum("bhnd,bhmd->bhnm", q, k) * (dim_head ** (-0.5))
    attn = jax.nn.softmax(dots, axis=-1)
    out = jnp.einsum("bhnm,bhmd->bhnd", attn, v)
    out = out.transpose(0, 2, 1, 3).reshape(B, N, inner)
    return out @ w_out + b_out


if __name__ == "__main__":
    # Small, lane-aligned shapes consistent with a ViT-1D Attention block.
    # B=4 so the batch-tiling path (Bt=2, grid=2) is exercised.
    B, N, dim = 4, 8, 128
    heads, dim_head = 4, 32
    inner = heads * dim_head  # 128 -> project_out is True (Linear(inner, dim))

    key = jax.random.PRNGKey(0)
    kx, kg, kb, kqkv, ko, kbo = jax.random.split(key, 6)

    x = jax.random.normal(kx, (B, N, dim), dtype=jnp.float32)

    # Non-trivial LayerNorm affine so the affine path is actually exercised.
    gamma = 1.0 + 0.1 * jax.random.normal(kg, (dim,), dtype=jnp.float32)
    beta = 0.1 * jax.random.normal(kb, (dim,), dtype=jnp.float32)

    # nn.Linear stores weight as (out, in); we keep the math x @ W with W = weight.T:
    # w_qkv: (dim, 3*inner)  [to_qkv, bias=False],  w_out: (inner, dim), b_out: (dim,)
    lim_qkv = 1.0 / math.sqrt(dim)
    lim_o = 1.0 / math.sqrt(inner)
    w_qkv = jax.random.uniform(kqkv, (dim, 3 * inner), jnp.float32, -lim_qkv, lim_qkv)
    w_out = jax.random.uniform(ko, (inner, dim), jnp.float32, -lim_o, lim_o)
    b_out = jax.random.uniform(kbo, (dim,), jnp.float32, -lim_o, lim_o)

    y = attention(x, gamma, beta, w_qkv, w_out, b_out,
                  heads=heads, dim_head=dim_head)
    y = jax.block_until_ready(y)

    y_ref = _reference(x, gamma, beta, w_qkv, w_out, b_out, heads, dim_head)
    assert y.shape == (B, N, dim)
    # bf16 matmul operands (fp32 accumulation) + approx reciprocal vs fp32
    # reference -> loosened tolerance.
    assert jnp.allclose(y, y_ref, atol=2e-2, rtol=2e-2), "mismatch vs JAX reference"

    print("KERNEL_OK")
</pallas_src>

<mosaic_0001>
module attributes {stable_mosaic.version = 11 : i64} {
  func.func @_attention_kernel(%arg0: i32, %arg1: memref<2x8x128xf32, #tpu.memory_space<vmem>>, %arg2: memref<1x128xf32, #tpu.memory_space<vmem>>, %arg3: memref<1x128xf32, #tpu.memory_space<vmem>>, %arg4: memref<128x384xbf16, #tpu.memory_space<vmem>>, %arg5: memref<128x128xbf16, #tpu.memory_space<vmem>>, %arg6: memref<1x128xf32, #tpu.memory_space<vmem>>, %arg7: memref<2x8x128xf32, #tpu.memory_space<vmem>>) attributes {dimension_semantics = [#tpu.dimension_semantics<parallel>], iteration_bounds = array<i64: 2>, scalar_prefetch = 0 : i64, scratch_operands = 0 : i64, tpu.core_type = #tpu.core_type<tc>, window_params = [{transform_indices = @transform_0, window_bounds = array<i64: 2, 8, 128>}, {pipeline_mode = #tpu.pipeline_mode<synchronous>, transform_indices = @transform_1, window_bounds = array<i64: 1, 128>}, {pipeline_mode = #tpu.pipeline_mode<synchronous>, transform_indices = @transform_2, window_bounds = array<i64: 1, 128>}, {pipeline_mode = #tpu.pipeline_mode<synchronous>, transform_indices = @transform_3, window_bounds = array<i64: 128, 384>}, {pipeline_mode = #tpu.pipeline_mode<synchronous>, transform_indices = @transform_4, window_bounds = array<i64: 128, 128>}, {pipeline_mode = #tpu.pipeline_mode<synchronous>, transform_indices = @transform_5, window_bounds = array<i64: 1, 128>}, {transform_indices = @transform_6, window_bounds = array<i64: 2, 8, 128>}]} {
    %c0 = arith.constant 0 : index
    %c0_0 = arith.constant 0 : index
    %c0_1 = arith.constant 0 : index
    %0 = vector.load %arg1[%c0, %c0_0, %c0_1] : memref<2x8x128xf32, #tpu.memory_space<vmem>>, vector<2x8x128xf32>
    %1 = vector.shape_cast %0 : vector<2x8x128xf32> to vector<16x128xf32>
    %cst = arith.constant dense<0.000000e+00> : vector<16xf32>
    %2 = vector.multi_reduction <add>, %1, %cst [1] : vector<16x128xf32> to vector<16xf32>
    %3 = vector.shape_cast %2 : vector<16xf32> to vector<16x1xf32>
    %cst_2 = arith.constant 1.280000e+02 : f32
    %4 = vector.broadcast %cst_2 : f32 to vector<16x1xf32>
    %5 = arith.divf %3, %4 : vector<16x1xf32>
    %6 = vector.broadcast %5 : vector<16x1xf32> to vector<16x128xf32>
    %7 = arith.subf %1, %6 : vector<16x128xf32>
    %8 = arith.mulf %7, %7 : vector<16x128xf32>
    %cst_3 = arith.constant dense<0.000000e+00> : vector<16xf32>
    %9 = vector.multi_reduction <add>, %8, %cst_3 [1] : vector<16x128xf32> to vector<16xf32>
    %10 = vector.shape_cast %9 : vector<16xf32> to vector<16x1xf32>
    %cst_4 = arith.constant 1.280000e+02 : f32
    %11 = vector.broadcast %cst_4 : f32 to vector<16x1xf32>
    %12 = arith.divf %10, %11 : vector<16x1xf32>
    %13 = vector.broadcast %5 : vector<16x1xf32> to vector<16x128xf32>
    %14 = arith.subf %1, %13 : vector<16x128xf32>
    %cst_5 = arith.constant 9.99999974E-6 : f32
    %15 = vector.broadcast %cst_5 : f32 to vector<16x1xf32>
    %16 = arith.addf %12, %15 : vector<16x1xf32>
    %17 = math.rsqrt %16 : vector<16x1xf32>
    %18 = vector.broadcast %17 : vector<16x1xf32> to vector<16x128xf32>
    %19 = arith.mulf %14, %18 : vector<16x128xf32>
    %c0_6 = arith.constant 0 : index
    %c0_7 = arith.constant 0 : index
    %20 = vector.load %arg2[%c0_6, %c0_7] : memref<1x128xf32, #tpu.memory_space<vmem>>, vector<1x128xf32>
    %21 = vector.broadcast %20 : vector<1x128xf32> to vector<16x128xf32>
    %22 = arith.mulf %19, %21 : vector<16x128xf32>
    %c0_8 = arith.constant 0 : index
    %c0_9 = arith.constant 0 : index
    %23 = vector.load %arg3[%c0_8, %c0_9] : memref<1x128xf32, #tpu.memory_space<vmem>>, vector<1x128xf32>
    %24 = vector.broadcast %23 : vector<1x128xf32> to vector<16x128xf32>
    %25 = arith.addf %22, %24 : vector<16x128xf32>
    %26 = arith.truncf %25 : vector<16x128xf32> to vector<16x128xbf16>
    %c0_10 = arith.constant 0 : index
    %c0_11 = arith.constant 0 : index
    %27 = vector.load %arg4[%c0_10, %c0_11] : memref<128x384xbf16, #tpu.memory_space<vmem>>, vector<128x384xbf16>
    %cst_12 = arith.constant dense<0.000000e+00> : vector<16x384xf32>
    %28 = tpu.matmul %26, %27, %cst_12 {dimension_numbers = #tpu.dot_dimension_numbers<[1], [0], [0], [1], [0, 0, 1, 1], [], []>} : vector<16x128xbf16>, vector<128x384xbf16>, vector<16x384xf32> -> vector<16x384xf32>
    %29 = vector.extract_strided_slice %28 {offsets = [0, 0], sizes = [16, 128], strides = [1, 1]} : vector<16x384xf32> to vector<16x128xf32>
    %30 = arith.truncf %29 : vector<16x128xf32> to vector<16x128xbf16>
    %31 = vector.extract_strided_slice %28 {offsets = [0, 128], sizes = [16, 128], strides = [1, 1]} : vector<16x384xf32> to vector<16x128xf32>
    %32 = arith.truncf %31 : vector<16x128xf32> to vector<16x128xbf16>
    %33 = vector.extract_strided_slice %28 {offsets = [0, 256], sizes = [16, 128], strides = [1, 1]} : vector<16x384xf32> to vector<16x128xf32>
    %34 = arith.truncf %33 : vector<16x128xf32> to vector<16x128xbf16>
    %35 = vector.extract_strided_slice %30 {offsets = [0, 0], sizes = [8, 32], strides = [1, 1]} : vector<16x128xbf16> to vector<8x32xbf16>
    %36 = vector.extract_strided_slice %32 {offsets = [0, 0], sizes = [8, 32], strides = [1, 1]} : vector<16x128xbf16> to vector<8x32xbf16>
    %37 = vector.extract_strided_slice %34 {offsets = [0, 0], sizes = [8, 32], strides = [1, 1]} : vector<16x128xbf16> to vector<8x32xbf16>
    %cst_13 = arith.constant dense<0.000000e+00> : vector<8x8xf32>
    %38 = tpu.matmul %35, %36, %cst_13 {dimension_numbers = #tpu.dot_dimension_numbers<[1], [1], [0], [0], [0, 0, 1, 0], [], []>} : vector<8x32xbf16>, vector<8x32xbf16>, vector<8x8xf32> -> vector<8x8xf32>
    %cst_14 = arith.constant dense<0xFF800000> : vector<8xf32>
    %39 = vector.multi_reduction <maximumf>, %38, %cst_14 [1] : vector<8x8xf32> to vector<8xf32>
    %40 = vector.shape_cast %39 : vector<8xf32> to vector<8x1xf32>
    %41 = vector.broadcast %40 : vector<8x1xf32> to vector<8x8xf32>
    %42 = arith.subf %38, %41 : vector<8x8xf32>
    %43 = math.exp %42 : vector<8x8xf32>
    %cst_15 = arith.constant dense<0.000000e+00> : vector<8xf32>
    %44 = vector.multi_reduction <add>, %43, %cst_15 [1] : vector<8x8xf32> to vector<8xf32>
    %45 = vector.shape_cast %44 : vector<8xf32> to vector<8x1xf32>
    %46 = arith.truncf %43 : vector<8x8xf32> to vector<8x8xbf16>
    %cst_16 = arith.constant dense<0.000000e+00> : vector<8x32xf32>
    %47 = tpu.matmul %46, %37, %cst_16 {dimension_numbers = #tpu.dot_dimension_numbers<[1], [0], [0], [1], [0, 0, 1, 1], [], []>} : vector<8x8xbf16>, vector<8x32xbf16>, vector<8x32xf32> -> vector<8x32xf32>
    %48 = tpu.reciprocal %45 {approx = true} : vector<8x1xf32> -> vector<8x1xf32>
    %49 = vector.broadcast %48 : vector<8x1xf32> to vector<8x32xf32>
    %50 = arith.mulf %47, %49 : vector<8x32xf32>
    %51 = arith.truncf %50 : vector<8x32xf32> to vector<8x32xbf16>
    %52 = vector.extract_strided_slice %30 {offsets = [0, 32], sizes = [8, 32], strides = [1, 1]} : vector<16x128xbf16> to vector<8x32xbf16>
    %53 = vector.extract_strided_slice %32 {offsets = [0, 32], sizes = [8, 32], strides = [1, 1]} : vector<16x128xbf16> to vector<8x32xbf16>
    %54 = vector.extract_strided_slice %34 {offsets = [0, 32], sizes = [8, 32], strides = [1, 1]} : vector<16x128xbf16> to vector<8x32xbf16>
    %cst_17 = arith.constant dense<0.000000e+00> : vector<8x8xf32>
    %55 = tpu.matmul %52, %53, %cst_17 {dimension_numbers = #tpu.dot_dimension_numbers<[1], [1], [0], [0], [0, 0, 1, 0], [], []>} : vector<8x32xbf16>, vector<8x32xbf16>, vector<8x8xf32> -> vector<8x8xf32>
    %cst_18 = arith.constant dense<0xFF800000> : vector<8xf32>
    %56 = vector.multi_reduction <maximumf>, %55, %cst_18 [1] : vector<8x8xf32> to vector<8xf32>
    %57 = vector.shape_cast %56 : vector<8xf32> to vector<8x1xf32>
    %58 = vector.broadcast %57 : vector<8x1xf32> to vector<8x8xf32>
    %59 = arith.subf %55, %58 : vector<8x8xf32>
    %60 = math.exp %59 : vector<8x8xf32>
    %cst_19 = arith.constant dense<0.000000e+00> : vector<8xf32>
    %61 = vector.multi_reduction <add>, %60, %cst_19 [1] : vector<8x8xf32> to vector<8xf32>
    %62 = vector.shape_cast %61 : vector<8xf32> to vector<8x1xf32>
    %63 = arith.truncf %60 : vector<8x8xf32> to vector<8x8xbf16>
    %cst_20 = arith.constant dense<0.000000e+00> : vector<8x32xf32>
    %64 = tpu.matmul %63, %54, %cst_20 {dimension_numbers = #tpu.dot_dimension_numbers<[1], [0], [0], [1], [0, 0, 1, 1], [], []>} : vector<8x8xbf16>, vector<8x32xbf16>, vector<8x32xf32> -> vector<8x32xf32>
    %65 = tpu.reciprocal %62 {approx = true} : vector<8x1xf32> -> vector<8x1xf32>
    %66 = vector.broadcast %65 : vector<8x1xf32> to vector<8x32xf32>
    %67 = arith.mulf %64, %66 : vector<8x32xf32>
    %68 = arith.truncf %67 : vector<8x32xf32> to vector<8x32xbf16>
    %69 = vector.extract_strided_slice %30 {offsets = [0, 64], sizes = [8, 32], strides = [1, 1]} : vector<16x128xbf16> to vector<8x32xbf16>
    %70 = vector.extract_strided_slice %32 {offsets = [0, 64], sizes = [8, 32], strides = [1, 1]} : vector<16x128xbf16> to vector<8x32xbf16>
    %71 = vector.extract_strided_slice %34 {offsets = [0, 64], sizes = [8, 32], strides = [1, 1]} : vector<16x128xbf16> to vector<8x32xbf16>
    %cst_21 = arith.constant dense<0.000000e+00> : vector<8x8xf32>
    %72 = tpu.matmul %69, %70, %cst_21 {dimension_numbers = #tpu.dot_dimension_numbers<[1], [1], [0], [0], [0, 0, 1, 0], [], []>} : vector<8x32xbf16>, vector<8x32xbf16>, vector<8x8xf32> -> vector<8x8xf32>
    %cst_22 = arith.constant dense<0xFF800000> : vector<8xf32>
    %73 = vector.multi_reduction <maximumf>, %72, %cst_22 [1] : vector<8x8xf32> to vector<8xf32>
    %74 = vector.shape_cast %73 : vector<8xf32> to vector<8x1xf32>
    %75 = vector.broadcast %74 : vector<8x1xf32> to vector<8x8xf32>
    %76 = arith.subf %72, %75 : vector<8x8xf32>
    %77 = math.exp %76 : vector<8x8xf32>
    %cst_23 = arith.constant dense<0.000000e+00> : vector<8xf32>
    %78 = vector.multi_reduction <add>, %77, %cst_23 [1] : vector<8x8xf32> to vector<8xf32>
    %79 = vector.shape_cast %78 : vector<8xf32> to vector<8x1xf32>
    %80 = arith.truncf %77 : vector<8x8xf32> to vector<8x8xbf16>
    %cst_24 = arith.constant dense<0.000000e+00> : vector<8x32xf32>
    %81 = tpu.matmul %80, %71, %cst_24 {dimension_numbers = #tpu.dot_dimension_numbers<[1], [0], [0], [1], [0, 0, 1, 1], [], []>} : vector<8x8xbf16>, vector<8x32xbf16>, vector<8x32xf32> -> vector<8x32xf32>
    %82 = tpu.reciprocal %79 {approx = true} : vector<8x1xf32> -> vector<8x1xf32>
    %83 = vector.broadcast %82 : vector<8x1xf32> to vector<8x32xf32>
    %84 = arith.mulf %81, %83 : vector<8x32xf32>
    %85 = arith.truncf %84 : vector<8x32xf32> to vector<8x32xbf16>
    %86 = vector.extract_strided_slice %30 {offsets = [0, 96], sizes = [8, 32], strides = [1, 1]} : vector<16x128xbf16> to vector<8x32xbf16>
    %87 = vector.extract_strided_slice %32 {offsets = [0, 96], sizes = [8, 32], strides = [1, 1]} : vector<16x128xbf16> to vector<8x32xbf16>
    %88 = vector.extract_strided_slice %34 {offsets = [0, 96], sizes = [8, 32], strides = [1, 1]} : vector<16x128xbf16> to vector<8x32xbf16>
    %cst_25 = arith.constant dense<0.000000e+00> : vector<8x8xf32>
    %89 = tpu.matmul %86, %87, %cst_25 {dimension_numbers = #tpu.dot_dimension_numbers<[1], [1], [0], [0], [0, 0, 1, 0], [], []>} : vector<8x32xbf16>, vector<8x32xbf16>, vector<8x8xf32> -> vector<8x8xf32>
    %cst_26 = arith.constant dense<0xFF800000> : vector<8xf32>
    %90 = vector.multi_reduction <maximumf>, %89, %cst_26 [1] : vector<8x8xf32> to vector<8xf32>
    %91 = vector.shape_cast %90 : vector<8xf32> to vector<8x1xf32>
    %92 = vector.broadcast %91 : vector<8x1xf32> to vector<8x8xf32>
    %93 = arith.subf %89, %92 : vector<8x8xf32>
    %94 = math.exp %93 : vector<8x8xf32>
    %cst_27 = arith.constant dense<0.000000e+00> : vector<8xf32>
    %95 = vector.multi_reduction <add>, %94, %cst_27 [1] : vector<8x8xf32> to vector<8xf32>
    %96 = vector.shape_cast %95 : vector<8xf32> to vector<8x1xf32>
    %97 = arith.truncf %94 : vector<8x8xf32> to vector<8x8xbf16>
    %cst_28 = arith.constant dense<0.000000e+00> : vector<8x32xf32>
    %98 = tpu.matmul %97, %88, %cst_28 {dimension_numbers = #tpu.dot_dimension_numbers<[1], [0], [0], [1], [0, 0, 1, 1], [], []>} : vector<8x8xbf16>, vector<8x32xbf16>, vector<8x32xf32> -> vector<8x32xf32>
    %99 = tpu.reciprocal %96 {approx = true} : vector<8x1xf32> -> vector<8x1xf32>
    %100 = vector.broadcast %99 : vector<8x1xf32> to vector<8x32xf32>
    %101 = arith.mulf %98, %100 : vector<8x32xf32>
    %102 = arith.truncf %101 : vector<8x32xf32> to vector<8x32xbf16>
    %103 = tpu.concatenate %51, %68, %85, %102 in 1 : vector<8x32xbf16>, vector<8x32xbf16>, vector<8x32xbf16>, vector<8x32xbf16> -> vector<8x128xbf16>
    %104 = vector.extract_strided_slice %30 {offsets = [8, 0], sizes = [8, 32], strides = [1, 1]} : vector<16x128xbf16> to vector<8x32xbf16>
    %105 = vector.extract_strided_slice %32 {offsets = [8, 0], sizes = [8, 32], strides = [1, 1]} : vector<16x128xbf16> to vector<8x32xbf16>
    %106 = vector.extract_strided_slice %34 {offsets = [8, 0], sizes = [8, 32], strides = [1, 1]} : vector<16x128xbf16> to vector<8x32xbf16>
    %cst_29 = arith.constant dense<0.000000e+00> : vector<8x8xf32>
    %107 = tpu.matmul %104, %105, %cst_29 {dimension_numbers = #tpu.dot_dimension_numbers<[1], [1], [0], [0], [0, 0, 1, 0], [], []>} : vector<8x32xbf16>, vector<8x32xbf16>, vector<8x8xf32> -> vector<8x8xf32>
    %cst_30 = arith.constant dense<0xFF800000> : vector<8xf32>
    %108 = vector.multi_reduction <maximumf>, %107, %cst_30 [1] : vector<8x8xf32> to vector<8xf32>
    %109 = vector.shape_cast %108 : vector<8xf32> to vector<8x1xf32>
    %110 = vector.broadcast %109 : vector<8x1xf32> to vector<8x8xf32>
    %111 = arith.subf %107, %110 : vector<8x8xf32>
    %112 = math.exp %111 : vector<8x8xf32>
    %cst_31 = arith.constant dense<0.000000e+00> : vector<8xf32>
    %113 = vector.multi_reduction <add>, %112, %cst_31 [1] : vector<8x8xf32> to vector<8xf32>
    %114 = vector.shape_cast %113 : vector<8xf32> to vector<8x1xf32>
    %115 = arith.truncf %112 : vector<8x8xf32> to vector<8x8xbf16>
    %cst_32 = arith.constant dense<0.000000e+00> : vector<8x32xf32>
    %116 = tpu.matmul %115, %106, %cst_32 {dimension_numbers = #tpu.dot_dimension_numbers<[1], [0], [0], [1], [0, 0, 1, 1], [], []>} : vector<8x8xbf16>, vector<8x32xbf16>, vector<8x32xf32> -> vector<8x32xf32>
    %117 = tpu.reciprocal %114 {approx = true} : vector<8x1xf32> -> vector<8x1xf32>
    %118 = vector.broadcast %117 : vector<8x1xf32> to vector<8x32xf32>
    %119 = arith.mulf %116, %118 : vector<8x32xf32>
    %120 = arith.truncf %119 : vector<8x32xf32> to vector<8x32xbf16>
    %121 = vector.extract_strided_slice %30 {offsets = [8, 32], sizes = [8, 32], strides = [1, 1]} : vector<16x128xbf16> to vector<8x32xbf16>
    %122 = vector.extract_strided_slice %32 {offsets = [8, 32], sizes = [8, 32], strides = [1, 1]} : vector<16x128xbf16> to vector<8x32xbf16>
    %123 = vector.extract_strided_slice %34 {offsets = [8, 32], sizes = [8, 32], strides = [1, 1]} : vector<16x128xbf16> to vector<8x32xbf16>
    %cst_33 = arith.constant dense<0.000000e+00> : vector<8x8xf32>
    %124 = tpu.matmul %121, %122, %cst_33 {dimension_numbers = #tpu.dot_dimension_numbers<[1], [1], [0], [0], [0, 0, 1, 0], [], []>} : vector<8x32xbf16>, vector<8x32xbf16>, vector<8x8xf32> -> vector<8x8xf32>
    %cst_34 = arith.constant dense<0xFF800000> : vector<8xf32>
    %125 = vector.multi_reduction <maximumf>, %124, %cst_34 [1] : vector<8x8xf32> to vector<8xf32>
    %126 = vector.shape_cast %125 : vector<8xf32> to vector<8x1xf32>
    %127 = vector.broadcast %126 : vector<8x1xf32> to vector<8x8xf32>
    %128 = arith.subf %124, %127 : vector<8x8xf32>
    %129 = math.exp %128 : vector<8x8xf32>
    %cst_35 = arith.constant dense<0.000000e+00> : vector<8xf32>
    %130 = vector.multi_reduction <add>, %129, %cst_35 [1] : vector<8x8xf32> to vector<8xf32>
    %131 = vector.shape_cast %130 : vector<8xf32> to vector<8x1xf32>
    %132 = arith.truncf %129 : vector<8x8xf32> to vector<8x8xbf16>
    %cst_36 = arith.constant dense<0.000000e+00> : vector<8x32xf32>
    %133 = tpu.matmul %132, %123, %cst_36 {dimension_numbers = #tpu.dot_dimension_numbers<[1], [0], [0], [1], [0, 0, 1, 1], [], []>} : vector<8x8xbf16>, vector<8x32xbf16>, vector<8x32xf32> -> vector<8x32xf32>
    %134 = tpu.reciprocal %131 {approx = true} : vector<8x1xf32> -> vector<8x1xf32>
    %135 = vector.broadcast %134 : vector<8x1xf32> to vector<8x32xf32>
    %136 = arith.mulf %133, %135 : vector<8x32xf32>
    %137 = arith.truncf %136 : vector<8x32xf32> to vector<8x32xbf16>
    %138 = vector.extract_strided_slice %30 {offsets = [8, 64], sizes = [8, 32], strides = [1, 1]} : vector<16x128xbf16> to vector<8x32xbf16>
    %139 = vector.extract_strided_slice %32 {offsets = [8, 64], sizes = [8, 32], strides = [1, 1]} : vector<16x128xbf16> to vector<8x32xbf16>
    %140 = vector.extract_strided_slice %34 {offsets = [8, 64], sizes = [8, 32], strides = [1, 1]} : vector<16x128xbf16> to vector<8x32xbf16>
    %cst_37 = arith.constant dense<0.000000e+00> : vector<8x8xf32>
    %141 = tpu.matmul %138, %139, %cst_37 {dimension_numbers = #tpu.dot_dimension_numbers<[1], [1], [0], [0], [0, 0, 1, 0], [], []>} : vector<8x32xbf16>, vector<8x32xbf16>, vector<8x8xf32> -> vector<8x8xf32>
    %cst_38 = arith.constant dense<0xFF800000> : vector<8xf32>
    %142 = vector.multi_reduction <maximumf>, %141, %cst_38 [1] : vector<8x8xf32> to vector<8xf32>
    %143 = vector.shape_cast %142 : vector<8xf32> to vector<8x1xf32>
    %144 = vector.broadcast %143 : vector<8x1xf32> to vector<8x8xf32>
    %145 = arith.subf %141, %144 : vector<8x8xf32>
    %146 = math.exp %145 : vector<8x8xf32>
    %cst_39 = arith.constant dense<0.000000e+00> : vector<8xf32>
    %147 = vector.multi_reduction <add>, %146, %cst_39 [1] : vector<8x8xf32> to vector<8xf32>
    %148 = vector.shape_cast %147 : vector<8xf32> to vector<8x1xf32>
    %149 = arith.truncf %146 : vector<8x8xf32> to vector<8x8xbf16>
    %cst_40 = arith.constant dense<0.000000e+00> : vector<8x32xf32>
    %150 = tpu.matmul %149, %140, %cst_40 {dimension_numbers = #tpu.dot_dimension_numbers<[1], [0], [0], [1], [0, 0, 1, 1], [], []>} : vector<8x8xbf16>, vector<8x32xbf16>, vector<8x32xf32> -> vector<8x32xf32>
    %151 = tpu.reciprocal %148 {approx = true} : vector<8x1xf32> -> vector<8x1xf32>
    %152 = vector.broadcast %151 : vector<8x1xf32> to vector<8x32xf32>
    %153 = arith.mulf %150, %152 : vector<8x32xf32>
    %154 = arith.truncf %153 : vector<8x32xf32> to vector<8x32xbf16>
    %155 = vector.extract_strided_slice %30 {offsets = [8, 96], sizes = [8, 32], strides = [1, 1]} : vector<16x128xbf16> to vector<8x32xbf16>
    %156 = vector.extract_strided_slice %32 {offsets = [8, 96], sizes = [8, 32], strides = [1, 1]} : vector<16x128xbf16> to vector<8x32xbf16>
    %157 = vector.extract_strided_slice %34 {offsets = [8, 96], sizes = [8, 32], strides = [1, 1]} : vector<16x128xbf16> to vector<8x32xbf16>
    %cst_41 = arith.constant dense<0.000000e+00> : vector<8x8xf32>
    %158 = tpu.matmul %155, %156, %cst_41 {dimension_numbers = #tpu.dot_dimension_numbers<[1], [1], [0], [0], [0, 0, 1, 0], [], []>} : vector<8x32xbf16>, vector<8x32xbf16>, vector<8x8xf32> -> vector<8x8xf32>
    %cst_42 = arith.constant dense<0xFF800000> : vector<8xf32>
    %159 = vector.multi_reduction <maximumf>, %158, %cst_42 [1] : vector<8x8xf32> to vector<8xf32>
    %160 = vector.shape_cast %159 : vector<8xf32> to vector<8x1xf32>
    %161 = vector.broadcast %160 : vector<8x1xf32> to vector<8x8xf32>
    %162 = arith.subf %158, %161 : vector<8x8xf32>
    %163 = math.exp %162 : vector<8x8xf32>
    %cst_43 = arith.constant dense<0.000000e+00> : vector<8xf32>
    %164 = vector.multi_reduction <add>, %163, %cst_43 [1] : vector<8x8xf32> to vector<8xf32>
    %165 = vector.shape_cast %164 : vector<8xf32> to vector<8x1xf32>
    %166 = arith.truncf %163 : vector<8x8xf32> to vector<8x8xbf16>
    %cst_44 = arith.constant dense<0.000000e+00> : vector<8x32xf32>
    %167 = tpu.matmul %166, %157, %cst_44 {dimension_numbers = #tpu.dot_dimension_numbers<[1], [0], [0], [1], [0, 0, 1, 1], [], []>} : vector<8x8xbf16>, vector<8x32xbf16>, vector<8x32xf32> -> vector<8x32xf32>
    %168 = tpu.reciprocal %165 {approx = true} : vector<8x1xf32> -> vector<8x1xf32>
    %169 = vector.broadcast %168 : vector<8x1xf32> to vector<8x32xf32>
    %170 = arith.mulf %167, %169 : vector<8x32xf32>
    %171 = arith.truncf %170 : vector<8x32xf32> to vector<8x32xbf16>
    %172 = tpu.concatenate %120, %137, %154, %171 in 1 : vector<8x32xbf16>, vector<8x32xbf16>, vector<8x32xbf16>, vector<8x32xbf16> -> vector<8x128xbf16>
    %173 = tpu.concatenate %103, %172 in 0 : vector<8x128xbf16>, vector<8x128xbf16> -> vector<16x128xbf16>
    %c0_45 = arith.constant 0 : index
    %c0_46 = arith.constant 0 : index
    %174 = vector.load %arg5[%c0_45, %c0_46] : memref<128x128xbf16, #tpu.memory_space<vmem>>, vector<128x128xbf16>
    %cst_47 = arith.constant dense<0.000000e+00> : vector<16x128xf32>
    %175 = tpu.matmul %173, %174, %cst_47 {dimension_numbers = #tpu.dot_dimension_numbers<[1], [0], [0], [1], [0, 0, 1, 1], [], []>} : vector<16x128xbf16>, vector<128x128xbf16>, vector<16x128xf32> -> vector<16x128xf32>
    %c0_48 = arith.constant 0 : index
    %c0_49 = arith.constant 0 : index
    %176 = vector.load %arg6[%c0_48, %c0_49] : memref<1x128xf32, #tpu.memory_space<vmem>>, vector<1x128xf32>
    %177 = vector.broadcast %176 : vector<1x128xf32> to vector<16x128xf32>
    %178 = arith.addf %175, %177 : vector<16x128xf32>
    %179 = vector.shape_cast %178 : vector<16x128xf32> to vector<2x8x128xf32>
    %c0_50 = arith.constant 0 : index
    %c0_51 = arith.constant 0 : index
    %c0_52 = arith.constant 0 : index
    %180 = vector.load %arg7[%c0_50, %c0_51, %c0_52] : memref<2x8x128xf32, #tpu.memory_space<vmem>>, vector<2x8x128xf32>
    tpu.vector_store %arg7[%c0_50, %c0_51, %c0_52], %179 {strides = array<i32>} : memref<2x8x128xf32, #tpu.memory_space<vmem>>, vector<2x8x128xf32>,
    return
  }
  func.func @transform_0(%arg0: i32) -> (i32, i32, i32) {
    %c0_i32 = arith.constant 0 : i32
    %c0_i32_0 = arith.constant 0 : i32
    %c0_i32_1 = arith.constant 0 : i32
    return %arg0, %c0_i32, %c0_i32_0 : i32, i32, i32
  }
  func.func @transform_1(%arg0: i32) -> (i32, i32) {
    %c0_i32 = arith.constant 0 : i32
    %c0_i32_0 = arith.constant 0 : i32
    %c0_i32_1 = arith.constant 0 : i32
    return %c0_i32, %c0_i32_0 : i32, i32
  }
  func.func @transform_2(%arg0: i32) -> (i32, i32) {
    %c0_i32 = arith.constant 0 : i32
    %c0_i32_0 = arith.constant 0 : i32
    %c0_i32_1 = arith.constant 0 : i32
    return %c0_i32, %c0_i32_0 : i32, i32
  }
  func.func @transform_3(%arg0: i32) -> (i32, i32) {
    %c0_i32 = arith.constant 0 : i32
    %c0_i32_0 = arith.constant 0 : i32
    %c0_i32_1 = arith.constant 0 : i32
    return %c0_i32, %c0_i32_0 : i32, i32
  }
  func.func @transform_4(%arg0: i32) -> (i32, i32) {
    %c0_i32 = arith.constant 0 : i32
    %c0_i32_0 = arith.constant 0 : i32
    %c0_i32_1 = arith.constant 0 : i32
    return %c0_i32, %c0_i32_0 : i32, i32
  }
  func.func @transform_5(%arg0: i32) -> (i32, i32) {
    %c0_i32 = arith.constant 0 : i32
    %c0_i32_0 = arith.constant 0 : i32
    %c0_i32_1 = arith.constant 0 : i32
    return %c0_i32, %c0_i32_0 : i32, i32
  }
  func.func @transform_6(%arg0: i32) -> (i32, i32, i32) {
    %c0_i32 = arith.constant 0 : i32
    %c0_i32_0 = arith.constant 0 : i32
    %c0_i32_1 = arith.constant 0 : i32
    return %arg0, %c0_i32, %c0_i32_0 : i32, i32, i32
  }
}

</mosaic_0001>

<llo_original>
// kernel: attention.1
$region0: #{attention.1}
  #allocation0 [shape = 'u32[]', space=smem, size = 0x4, offset = 0x4, fixed_abs, tag = 'smem constant byte address 0x4 - core index']
  #allocation1 [shape = 'u32[72,128]{1,0:T(1,128)}', space=vmem, size = 0x9000, scoped, tag = 'internal scratch']
  %s0 = inlined_call_operand.vmem [shape: f32[4,8,128], index: 0, kind: input, shape index: {}]
  %s1 = inlined_call_operand.vmem [shape: f32[1,128], index: 1, kind: input, shape index: {}]
  %s2 = inlined_call_operand.vmem [shape: f32[1,128], index: 2, kind: input, shape index: {}]
  %s3 = inlined_call_operand.vmem [shape: bf16[128,384], index: 3, kind: input, shape index: {}]
  %s4 = inlined_call_operand.vmem [shape: bf16[128,128], index: 4, kind: input, shape index: {}]
  %s5 = inlined_call_operand.vmem [shape: f32[1,128], index: 5, kind: input, shape index: {}]
  %s6 = inlined_call_operand.hbm [shape: f32[4,8,128], index: 6, kind: output, shape index: {}]
  %s7 = sld [smem:[#allocation0]]
  $region57: #{attention.1} parent=0
    _
  %s9 = ssub.s32 1, %s7
  %s10 = scalar_select 0, %s9, %s7
  $region1: #{attention.1} parent=0
    #allocation2 [shape = 'u8[16384]{0}', space=vmem, size = 0x4000, scoped, tag = 'output window, operand 0']
    #allocation3 [shape = 's32[2]{0}', space=sflag, size = 0x8, scoped, tag = 'scoped memory for attention.1']
    %11 = vsyncpa [#allocation3], 0
    %s12 = scalar_lea.sflag [#allocation3], 1
    %13 = vsyncpa %s12, 0
    loop: start=0, step=1, limit=4
    $region2: #{attention.1} parent=1 // loop_pre_header
      _
    $region3: #{attention.1} parent=1 // loop_header
      %s15 = sphi 0, %s19
      %p16 = scmp.ge.s32.totalorder %s15, 4
      %s25 = sphi 0, %s27
      %s28 = sphi 0, %s25
      %s29 = sphi 0, %s28
      %s45 = sphi 0, %s29
      %s49 = sphi 0, %s49
      %s51 = sphi 0, %s49
      %s52 = sphi 0, %s51
      %s66 = sphi 0, %s52
      %s70 = sphi 0, %s70
      %s72 = sphi 0, %s70
      %s73 = sphi 0, %s72
      %s87 = sphi 0, %s73
      %s91 = sphi 0, %s91
      %s93 = sphi 0, %s91
      %s94 = sphi 0, %s93
      %s108 = sphi 0, %s94
      %s112 = sphi 0, %s112
      %s114 = sphi 0, %s112
      %s115 = sphi 0, %s114
      %s129 = sphi 0, %s115
      %s133 = sphi 0, %s133
      %s135 = sphi 0, %s133
      %s136 = sphi 0, %s135
      %s150 = sphi 0, %s136
      %s156 = sphi 0, %s158
      %s159 = sphi 0, %s156
      %s160 = sphi 0, %s159
      %s176 = sphi 0, %s160
    $region4: #{attention.1} parent=1 // loop_header_branch
      %18 = sbr.rel (%p16) target = $region8
    $region5: #{attention.1} parent=1 // loop_body
      %s20 = ssub.s32 %s15, 1
      %s21 = ssub.s32 %s15, 2
      %s22 = sadd.s32 %s15, 1
      %s23 = ssub.s32 %s15, %s22
      %p24 = scmp.eq.s32.totalorder %s23, 0
      %s26 = sadd.s32 %s25, 1
      %s27 = scalar_select %p24, %s25, %s26
      %p30 = pneg %p24
      %p31 = scmp.eq.s32.totalorder %s15, 1
      %p32 = por %p30, %p31
      %p33 = scmp.ne.s32.totalorder %s25, %s28
      %p34 = scmp.eq.s32.totalorder %s15, 0
      %p35 = por %p33, %p34
      %p36 = scmp.ne.s32.totalorder %s25, %s28
      %p37 = scmp.eq.s32.totalorder %s20, 1
      %p38 = por %p36, %p37
      %p39 = scmp.ne.s32.totalorder %s28, %s29
      %p40 = scmp.eq.s32.totalorder %s20, 0
      %p41 = por %p39, %p40
      %p42 = scmp.ne.s32.totalorder %s28, %s29
      %p43 = scmp.eq.s32.totalorder %s21, 1
      %p44 = por %p42, %p43
      %p46 = scmp.ne.s32.totalorder %s29, %s45
      %p47 = scmp.eq.s32.totalorder %s21, 0
      %p48 = por %p46, %p47
      %s50 = sadd.s32 %s49, 1
      %p53 = scmp.eq.s32.totalorder %s15, 1
      %p54 = scmp.ne.s32.totalorder %s49, %s51
      %p55 = scmp.eq.s32.totalorder %s15, 0
      %p56 = por %p54, %p55
      %p57 = scmp.ne.s32.totalorder %s49, %s51
      %p58 = scmp.eq.s32.totalorder %s20, 1
      %p59 = por %p57, %p58
      %p60 = scmp.ne.s32.totalorder %s51, %s52
      %p61 = scmp.eq.s32.totalorder %s20, 0
      %p62 = por %p60, %p61
      %p63 = scmp.ne.s32.totalorder %s51, %s52
      %p64 = scmp.eq.s32.totalorder %s21, 1
      %p65 = por %p63, %p64
      %p67 = scmp.ne.s32.totalorder %s52, %s66
      %p68 = scmp.eq.s32.totalorder %s21, 0
      %p69 = por %p67, %p68
      %s71 = sadd.s32 %s70, 1
      %p74 = scmp.eq.s32.totalorder %s15, 1
      %p75 = scmp.ne.s32.totalorder %s70, %s72
      %p76 = scmp.eq.s32.totalorder %s15, 0
      %p77 = por %p75, %p76
      %p78 = scmp.ne.s32.totalorder %s70, %s72
      %p79 = scmp.eq.s32.totalorder %s20, 1
      %p80 = por %p78, %p79
      %p81 = scmp.ne.s32.totalorder %s72, %s73
      %p82 = scmp.eq.s32.totalorder %s20, 0
      %p83 = por %p81, %p82
      %p84 = scmp.ne.s32.totalorder %s72, %s73
      %p85 = scmp.eq.s32.totalorder %s21, 1
      %p86 = por %p84, %p85
      %p88 = scmp.ne.s32.totalorder %s73, %s87
      %p89 = scmp.eq.s32.totalorder %s21, 0
      %p90 = por %p88, %p89
      %s92 = sadd.s32 %s91, 1
      %p95 = scmp.eq.s32.totalorder %s15, 1
      %p96 = scmp.ne.s32.totalorder %s91, %s93
      %p97 = scmp.eq.s32.totalorder %s15, 0
      %p98 = por %p96, %p97
      %p99 = scmp.ne.s32.totalorder %s91, %s93
      %p100 = scmp.eq.s32.totalorder %s20, 1
      %p101 = por %p99, %p100
      %p102 = scmp.ne.s32.totalorder %s93, %s94
      %p103 = scmp.eq.s32.totalorder %s20, 0
      %p104 = por %p102, %p103
      %p105 = scmp.ne.s32.totalorder %s93, %s94
      %p106 = scmp.eq.s32.totalorder %s21, 1
      %p107 = por %p105, %p106
      %p109 = scmp.ne.s32.totalorder %s94, %s108
      %p110 = scmp.eq.s32.totalorder %s21, 0
      %p111 = por %p109, %p110
      %s113 = sadd.s32 %s112, 1
      %p116 = scmp.eq.s32.totalorder %s15, 1
      %p117 = scmp.ne.s32.totalorder %s112, %s114
      %p118 = scmp.eq.s32.totalorder %s15, 0
      %p119 = por %p117, %p118
      %p120 = scmp.ne.s32.totalorder %s112, %s114
      %p121 = scmp.eq.s32.totalorder %s20, 1
      %p122 = por %p120, %p121
      %p123 = scmp.ne.s32.totalorder %s114, %s115
      %p124 = scmp.eq.s32.totalorder %s20, 0
      %p125 = por %p123, %p124
      %p126 = scmp.ne.s32.totalorder %s114, %s115
      %p127 = scmp.eq.s32.totalorder %s21, 1
      %p128 = por %p126, %p127
      %p130 = scmp.ne.s32.totalorder %s115, %s129
      %p131 = scmp.eq.s32.totalorder %s21, 0
      %p132 = por %p130, %p131
      %s134 = sadd.s32 %s133, 1
      %p137 = scmp.eq.s32.totalorder %s15, 1
      %p138 = scmp.ne.s32.totalorder %s133, %s135
      %p139 = scmp.eq.s32.totalorder %s15, 0
      %p140 = por %p138, %p139
      %p141 = scmp.ne.s32.totalorder %s133, %s135
      %p142 = scmp.eq.s32.totalorder %s20, 1
      %p143 = por %p141, %p142
      %p144 = scmp.ne.s32.totalorder %s135, %s136
      %p145 = scmp.eq.s32.totalorder %s20, 0
      %p146 = por %p144, %p145
      %p147 = scmp.ne.s32.totalorder %s135, %s136
      %p148 = scmp.eq.s32.totalorder %s21, 1
      %p149 = por %p147, %p148
      %p151 = scmp.ne.s32.totalorder %s136, %s150
      %p152 = scmp.eq.s32.totalorder %s21, 0
      %p153 = por %p151, %p152
      %s154 = ssub.s32 %s15, %s22
      %p155 = scmp.eq.s32.totalorder %s154, 0
      %s157 = sadd.s32 %s156, 1
      %s158 = scalar_select %p155, %s156, %s157
      %p161 = pneg %p155
      %p162 = scmp.eq.s32.totalorder %s15, 1
      %p163 = por %p161, %p162
      %p164 = scmp.ne.s32.totalorder %s156, %s159
      %p165 = scmp.eq.s32.totalorder %s15, 0
      %p166 = por %p164, %p165
      %p167 = scmp.ne.s32.totalorder %s156, %s159
      %p168 = scmp.eq.s32.totalorder %s20, 1
      %p169 = por %p167, %p168
      %p170 = scmp.ne.s32.totalorder %s159, %s160
      %p171 = scmp.eq.s32.totalorder %s20, 0
      %p172 = por %p170, %p171
      %p173 = scmp.ne.s32.totalorder %s159, %s160
      %p174 = scmp.eq.s32.totalorder %s21, 1
      %p175 = por %p173, %p174
      %p177 = scmp.ne.s32.totalorder %s160, %s176
      %p178 = scmp.eq.s32.totalorder %s21, 0
      %p179 = por %p177, %p178
      %p180 = scmp.le.s32.totalorder 1, %s15
      %p181 = scmp.lt.s32.totalorder %s15, 3
      %p182 = pnand %p180, %p181
      %p183 = pneg %p182
      // Predicated region
      $region9: #{attention.1} parent=5 // pred_check
        _
      $region10: #{attention.1} parent=5 // pred_check_branch
        %185 = sbr.rel (%p182) target = $region12
      $region11: #{attention.1} parent=5 // pred_region
        %s186 = ssub.s32 %s15, 1
        // Predicated region
        $region13: #{attention.1} parent=11 // pred_check
          %p187 = pneg %p62
        $region14: #{attention.1} parent=11 // pred_check_branch
          %189 = sbr.rel (%p187) target = $region16
        $region15: #{attention.1} parent=11 // pred_region
          _
        $region16: #{attention.1} parent=11 // pred_fallthru
          _
        // Predicated region
        $region17: #{attention.1} parent=11 // pred_check
          %p190 = pneg %p83
        $region18: #{attention.1} parent=11 // pred_check_branch
          %192 = sbr.rel (%p190) target = $region20
        $region19: #{attention.1} parent=11 // pred_region
          _
        $region20: #{attention.1} parent=11 // pred_fallthru
          _
        // Predicated region
        $region21: #{attention.1} parent=11 // pred_check
          %p193 = pneg %p104
        $region22: #{attention.1} parent=11 // pred_check_branch
          %195 = sbr.rel (%p193) target = $region24
        $region23: #{attention.1} parent=11 // pred_region
          _
        $region24: #{attention.1} parent=11 // pred_fallthru
          _
        // Predicated region
        $region25: #{attention.1} parent=11 // pred_check
          %p196 = pneg %p125
        $region26: #{attention.1} parent=11 // pred_check_branch
          %198 = sbr.rel (%p196) target = $region28
        $region27: #{attention.1} parent=11 // pred_region
          _
        $region28: #{attention.1} parent=11 // pred_fallthru
          _
        // Predicated region
        $region29: #{attention.1} parent=11 // pred_check
          %p199 = pneg %p146
        $region30: #{attention.1} parent=11 // pred_check_branch
          %201 = sbr.rel (%p199) target = $region32
        $region31: #{attention.1} parent=11 // pred_region
          _
        $region32: #{attention.1} parent=11 // pred_fallthru
          _
      $region12: #{attention.1} parent=5 // pred_fallthru
        _
      %p202 = scmp.lt.s32.totalorder %s15, 2
      // Predicated region
      $region33: #{attention.1} parent=5 // pred_check
        %p203 = pneg %p202
      $region34: #{attention.1} parent=5 // pred_check_branch
        %205 = sbr.rel (%p203) target = $region36
      $region35: #{attention.1} parent=5 // pred_region
        // Predicated region
        $region37: #{attention.1} parent=35 // pred_check
          %p206 = pneg %p35
        $region38: #{attention.1} parent=35 // pred_check_branch
          %208 = sbr.rel (%p206) target = $region40
        $region39: #{attention.1} parent=35 // pred_region
          %s209 = smul.u32 2, %s15
          %p210 = scmp.lt.s32.totalorder %s209, 3
          %s211 = scalar_select %p210, %s209, 3
          %s212 = smul.addr %s211, 8
          %s213 = scalar_lea.vmem %s0, %s212
          %s214 = smul.u32 2, %s15
        $region40: #{attention.1} parent=35 // pred_fallthru
          _
      $region36: #{attention.1} parent=5 // pred_fallthru
        _
      %p215 = scmp.le.s32.totalorder 1, %s15
      %p216 = scmp.lt.s32.totalorder %s15, 3
      %p217 = pnand %p215, %p216
      %p218 = pneg %p217
      // Predicated region
      $region41: #{attention.1} parent=5 // pred_check
        _
      $region42: #{attention.1} parent=5 // pred_check_branch
        %220 = sbr.rel (%p217) target = $region44
      $region43: #{attention.1} parent=5 // pred_region
        %s221 = ssub.s32 %s15, 1
        %s222 = smul.u32 2, %s20
        %p223 = scmp.lt.s32.totalorder %s222, 3
        %s224 = scalar_select %p223, %s222, 3
        %s225 = smul.addr %s224, 8
        %s226 = scalar_lea.vmem %s0, %s225
        %p227 = pneg %p41
        %p228 = pneg %p38
        %p229 = pneg %p62
        %p230 = pneg %p59
        %p231 = pneg %p83
        %p232 = pneg %p80
        %p233 = pneg %p104
        %p234 = pneg %p101
        %p235 = pneg %p125
        %p236 = pneg %p122
        %p237 = pneg %p146
        %p238 = pneg %p143
        %p239 = pneg %p172
        %p240 = pneg %p169
        %s241 = sand.u32 %s159, 1
        %s242 = scalar_lea.sflag [#allocation3], %s241
        %s243 = sand.u32 %s159, 1
        %s244 = smul.addr %s243, 16
        %s245 = scalar_lea.vmem [#allocation2], %s244
        %s246 = smul.u32 2, %s20
        %p247 = scmp.lt.s32.totalorder %s246, 3
        %s248 = scalar_select %p247, %s246, 3
        %s249 = smul.addr %s248, 8
        %s250 = scalar_lea.vmem %s0, %s249
        %s251 = smul.u32 2, %s20
        %s252 = smul.u32 2, %s20
        %v254 = vld [vmem:[%s250] sm:$0xff]
        %v255 = vld [vmem:[%s250 + $0x8] sm:$0xff]
        %256 = vadd.xlane.f32.xlu0 %v254
        %v257 = vpop.xlane.xlu0 %256
        %258 = vadd.xlane.f32.xlu0 %v255
        %v259 = vpop.xlane.xlu0 %258
        %v260 = vrcp.pop 128.0
        %v261 = vmul.f32 128.0, %v260
        %v262 = vsub.f32 1.0, %v261
        %v263 = vmul.f32 %v260, %v262
        %v264 = vadd.f32 %v260, %v263
        %vm265 = vweird.f32 %v260
        %v266 = vsel %vm265, %v260, %v264
        %v267 = vmul.f32 %v257, %v266
        %v268 = vmul.f32 %v259, %v266
        %v269 = vsub.f32 %v254, %v267
        %v270 = vsub.f32 %v255, %v268
        %v271 = vmul.f32 %v269, %v269
        %v272 = vmul.f32 %v270, %v270
        %273 = vadd.xlane.f32.xlu0 %v271
        %v274 = vpop.xlane.xlu0 %273
        %275 = vadd.xlane.f32.xlu0 %v272
        %v276 = vpop.xlane.xlu0 %275
        %v277 = vmul.f32 %v274, %v266
        %v278 = vmul.f32 %v276, %v266
        %v279 = vadd.f32 %v277, 1e-05
        %v280 = vadd.f32 %v278, 1e-05
        %v281 = vrsqrt.pop %v279
        %v282 = vmul.f32 %v281, %v279
        %v283 = vmul.f32 %v282, %v281
        %v284 = vmul.f32 0.5, %v283
        %v285 = vsub.f32 1.5, %v284
        %v286 = vmul.f32 %v281, %v285
        %vm287 = vweird.f32 %v279
        %vm288 = vweird.f32 %v281
        %vm289 = vmor %vm287, %vm288
        %v290 = vsel %vm289, %v281, %v286
        %v291 = vrsqrt.pop %v280
        %v292 = vmul.f32 %v291, %v280
        %v293 = vmul.f32 %v292, %v291
        %v294 = vmul.f32 0.5, %v293
        %v295 = vsub.f32 1.5, %v294
        %v296 = vmul.f32 %v291, %v295
        %vm297 = vweird.f32 %v280
        %vm298 = vweird.f32 %v291
        %vm299 = vmor %vm297, %vm298
        %v300 = vsel %vm299, %v291, %v296
        %v301 = vmul.f32 %v269, %v290
        %v302 = vmul.f32 %v270, %v300
        %v303 = vld [vmem:[%s1] sm:$0x1]
        %v305 = vperm.slane %v303, 0
        %v307 = vmul.f32 %v301, %v305
        %v308 = vmul.f32 %v302, %v305
        %v309 = vld [vmem:[%s2] sm:$0x1]
        %v311 = vperm.slane %v309, 0
        %v313 = vadd.f32 %v307, %v311
        %v314 = vadd.f32 %v308, %v311
        %v315 = vpack.c.bf16 %v314, %v313
        %v316 = vld [vmem:[%s3] sm:$0xff]
        %v317 = vld [vmem:[%s3 + $0x8] sm:$0xf]
        %v318 = vld [vmem:[%s3 + $0xc] sm:$0xff]
        %v319 = vld [vmem:[%s3 + $0x14] sm:$0xf]
        %v320 = vld [vmem:[%s3 + $0x18] sm:$0xff]
        %v321 = vld [vmem:[%s3 + $0x20] sm:$0xf]
        %v322 = vld [vmem:[%s3 + $0x24] sm:$0xff]
        %v323 = vld [vmem:[%s3 + $0x2c] sm:$0xf]
        %v324 = vld [vmem:[%s3 + $0x30] sm:$0xff]
        %v325 = vld [vmem:[%s3 + $0x38] sm:$0xf]
        %v326 = vld [vmem:[%s3 + $0x3c] sm:$0xff]
        %v327 = vld [vmem:[%s3 + $0x44] sm:$0xf]
        %v328 = vld [vmem:[%s3 + $0x48] sm:$0xff]
        %v329 = vld [vmem:[%s3 + $0x50] sm:$0xf]
        %v330 = vld [vmem:[%s3 + $0x54] sm:$0xff]
        %v331 = vld [vmem:[%s3 + $0x5c] sm:$0xf]
        %v332 = vld [vmem:[%s3 + $0x60] sm:$0xff]
        %v333 = vld [vmem:[%s3 + $0x68] sm:$0xf]
        %v334 = vld [vmem:[%s3 + $0x6c] sm:$0xff]
        %v335 = vld [vmem:[%s3 + $0x74] sm:$0xf]
        %v336 = vld [vmem:[%s3 + $0x78] sm:$0xff]
        %v337 = vld [vmem:[%s3 + $0x80] sm:$0xf]
        %v338 = vld [vmem:[%s3 + $0x84] sm:$0xff]
        %v339 = vld [vmem:[%s3 + $0x8c] sm:$0xf]
        %v340 = vld [vmem:[%s3 + $0x90] sm:$0xff]
        %v341 = vld [vmem:[%s3 + $0x98] sm:$0xf]
        %v342 = vld [vmem:[%s3 + $0x9c] sm:$0xff]
        %v343 = vld [vmem:[%s3 + $0xa4] sm:$0xf]
        %v344 = vld [vmem:[%s3 + $0xa8] sm:$0xff]
        %v345 = vld [vmem:[%s3 + $0xb0] sm:$0xf]
        %v346 = vld [vmem:[%s3 + $0xb4] sm:$0xff]
        %v347 = vld [vmem:[%s3 + $0xbc] sm:$0xf]
        %v380 = vunpack.c.l.b16 %v316
        %v381 = vunpack.c.h.b16 %v316
        %v382 = vunpack.c.l.b16 %v317
        %v383 = vunpack.c.l.b16 %v318
        %v384 = vunpack.c.h.b16 %v318
        %v385 = vunpack.c.l.b16 %v319
        %v386 = vunpack.c.l.b16 %v320
        %v387 = vunpack.c.h.b16 %v320
        %v388 = vunpack.c.l.b16 %v321
        %v389 = vunpack.c.l.b16 %v322
        %v390 = vunpack.c.h.b16 %v322
        %v391 = vunpack.c.l.b16 %v323
        %v392 = vunpack.c.l.b16 %v324
        %v393 = vunpack.c.h.b16 %v324
        %v394 = vunpack.c.l.b16 %v325
        %v395 = vunpack.c.l.b16 %v326
        %v396 = vunpack.c.h.b16 %v326
        %v397 = vunpack.c.l.b16 %v327
        %v398 = vunpack.c.l.b16 %v328
        %v399 = vunpack.c.h.b16 %v328
        %v400 = vunpack.c.l.b16 %v329
        %v401 = vunpack.c.l.b16 %v330
        %v402 = vunpack.c.h.b16 %v330
        %v403 = vunpack.c.l.b16 %v331
        %v404 = vunpack.c.l.b16 %v332
        %v405 = vunpack.c.h.b16 %v332
        %v406 = vunpack.c.l.b16 %v333
        %v407 = vunpack.c.l.b16 %v334
        %v408 = vunpack.c.h.b16 %v334
        %v409 = vunpack.c.l.b16 %v335
        %v410 = vunpack.c.l.b16 %v336
        %v411 = vunpack.c.h.b16 %v336
        %v412 = vunpack.c.l.b16 %v337
        %v413 = vunpack.c.l.b16 %v338
        %v414 = vunpack.c.h.b16 %v338
        %v415 = vunpack.c.l.b16 %v339
        %v416 = vunpack.c.l.b16 %v340
        %v417 = vunpack.c.h.b16 %v340
        %v418 = vunpack.c.l.b16 %v341
        %v419 = vunpack.c.l.b16 %v342
        %v420 = vunpack.c.h.b16 %v342
        %v421 = vunpack.c.l.b16 %v343
        %v422 = vunpack.c.l.b16 %v344
        %v423 = vunpack.c.h.b16 %v344
        %v424 = vunpack.c.l.b16 %v345
        %v425 = vunpack.c.l.b16 %v346
        %v426 = vunpack.c.h.b16 %v346
        %v427 = vunpack.c.l.b16 %v347
        %v428 = vpack.c.b16 %v383, %v380
        %v429 = vpack.c.b16 %v384, %v381
        %v430 = vpack.c.b16 %v385, %v382
        %v431 = vpack.c.b16 %v389, %v386
        %v432 = vpack.c.b16 %v390, %v387
        %v433 = vpack.c.b16 %v391, %v388
        %v434 = vpack.c.b16 %v395, %v392
        %v435 = vpack.c.b16 %v396, %v393
        %v436 = vpack.c.b16 %v397, %v394
        %v437 = vpack.c.b16 %v401, %v398
        %v438 = vpack.c.b16 %v402, %v399
        %v439 = vpack.c.b16 %v403, %v400
        %v440 = vpack.c.b16 %v407, %v404
        %v441 = vpack.c.b16 %v408, %v405
        %v442 = vpack.c.b16 %v409, %v406
        %v443 = vpack.c.b16 %v413, %v410
        %v444 = vpack.c.b16 %v414, %v411
        %v445 = vpack.c.b16 %v415, %v412
        %v446 = vpack.c.b16 %v419, %v416
        %v447 = vpack.c.b16 %v420, %v417
        %v448 = vpack.c.b16 %v421, %v418
        %v449 = vpack.c.b16 %v425, %v422
        %v450 = vpack.c.b16 %v426, %v423
        %v451 = vpack.c.b16 %v427, %v424
        %476 = vmatpush.bf16.msra.mxu0 %v449
        %477 = vmatpush.bf16.msra.mxu0 %v446
        %478 = vmatpush.bf16.msra.mxu0 %v443
        %479 = vmatpush.bf16.msra.mxu0 %v440
        %480 = vmatpush.bf16.msra.mxu0 %v437
        %481 = vmatpush.bf16.msra.mxu0 %v434
        %482 = vmatpush.bf16.msra.mxu0 %v431
        %483 = vmatpush.bf16.msra.mxu0 %v428
        %484 = vmatmul.bf16.gmra.mxu0 %v315
        %v485 = vpop.f32.mrf.mxu0
        %v486 = vadd.f32 0.0, %v485
        %v487 = vpop.f32.mrf.mxu0
        %v488 = vadd.f32 0.0, %v487
        %489 = vdwg.mxu0
        %490 = vmatpush.bf16.msra.mxu0 %v450
        %491 = vmatpush.bf16.msra.mxu0 %v447
        %492 = vmatpush.bf16.msra.mxu0 %v444
        %493 = vmatpush.bf16.msra.mxu0 %v441
        %494 = vmatpush.bf16.msra.mxu0 %v438
        %495 = vmatpush.bf16.msra.mxu0 %v435
        %496 = vmatpush.bf16.msra.mxu0 %v432
        %497 = vmatpush.bf16.msra.mxu0 %v429
        %498 = vmatmul.bf16.gmra.mxu0 %v315
        %v499 = vpop.f32.mrf.mxu0
        %v500 = vadd.f32 0.0, %v499
        %v501 = vpop.f32.mrf.mxu0
        %v502 = vadd.f32 0.0, %v501
        %503 = vdwg.mxu0
        %504 = vmatpush.bf16.msra.mxu0 %v451
        %505 = vmatpush.bf16.msra.mxu0 %v448
        %506 = vmatpush.bf16.msra.mxu0 %v445
        %507 = vmatpush.bf16.msra.mxu0 %v442
        %508 = vmatpush.bf16.msra.mxu0 %v439
        %509 = vmatpush.bf16.msra.mxu0 %v436
        %510 = vmatpush.bf16.msra.mxu0 %v433
        %511 = vmatpush.bf16.msra.mxu0 %v430
        %512 = vmatmul.bf16.gmra.mxu0 %v315
        %v513 = vpop.f32.mrf.mxu0
        %v514 = vadd.f32 0.0, %v513
        %v515 = vpop.f32.mrf.mxu0
        %v516 = vadd.f32 0.0, %v515
        %517 = vdwg.mxu0
        %v518 = vpack.c.bf16 %v486, %v486
        %v519 = vpack.c.bf16 %v488, %v488
        %v520 = vpack.c.bf16 %v500, %v500
        %v521 = vpack.c.bf16 %v502, %v502
        %v522 = vpack.c.bf16 %v514, %v514
        %v523 = vpack.c.bf16 %v516, %v516
        %vm524 = vcmask 261120
        %v526 = vsel %vm524, %v518, 0
        %v529 = vsel %vm524, %v520, 0
        %531 = vmatpush.bf16.xpose.msra.mxu0 0
        %532 = vmatpush.bf16.xpose.msra.mxu0 0
        %533 = vmatpush.bf16.xpose.msra.mxu0 0
        %534 = vmatpush.bf16.xpose.msra.mxu0 0
        %535 = vmatpush.bf16.xpose.msra.mxu0 0
        %536 = vmatpush.bf16.xpose.msra.mxu0 0
        %537 = vmatpush.bf16.xpose.msra.mxu0 0
        %538 = vmatpush.bf16.xpose.msra.mxu0 %v529
        %539 = vmatmul.bf16.gmra.mxu0 %v526
        %v540 = vpop.f32.mrf.mxu0
        %v541 = vadd.f32 0.0, %v540
        %v542 = vpop.f32.mrf.mxu0
        %543 = vdwg.mxu0
        %vm544 = vcmask 64512
        %v545 = vsel %vm544, %v541, -inf
        %546 = vmax.xlane.f32.xlu0 %v545
        %v547 = vpop.xlane.xlu0 %546
        %v548 = vsub.f32 %v541, %v547
        %v549 = vmul.f32 %v548, 1.442695
        %v550 = vpow.pop %v549
        %v551 = vsel %vm544, %v550, 0.0
        %552 = vadd.xlane.f32.xlu0 %v551
        %v553 = vpop.xlane.xlu0 %552
        %v554 = vpack.c.bf16 %v550, %v550
        %v556 = vsel %vm544, %v554, 0
        %vm558 = vcmask 1043456
        %v560 = vsel %vm558, %v522, 0
        %562 = vmatpush.bf16.msra.mxu0 0
        %563 = vmatpush.bf16.msra.mxu0 0
        %564 = vmatpush.bf16.msra.mxu0 0
        %565 = vmatpush.bf16.msra.mxu0 0
        %566 = vmatpush.bf16.msra.mxu0 0
        %567 = vmatpush.bf16.msra.mxu0 0
        %568 = vmatpush.bf16.msra.mxu0 0
        %569 = vmatpush.bf16.msra.mxu0 %v560
        %570 = vmatmul.bf16.gmra.mxu0 %v556
        %v571 = vpop.f32.mrf.mxu0
        %v572 = vadd.f32 0.0, %v571
        %v573 = vpop.f32.mrf.mxu0
        %574 = vdwg.mxu0
        %v575 = vrcp.pop %v553
        %v576 = vmul.f32 %v572, %v575
        %v577 = vpack.c.bf16 %v576, %v576
        %v579 = vunpack.c.l.b16 %v518
        %v580 = vpack.c.b16 %v579, %v579
        %581 = vrot.lane.b32.xlu0 %v580, 96
        %v582 = vpop.permute.xlu0 %581
        %v584 = vunpack.c.l.b16 %v520
        %v585 = vpack.c.b16 %v584, %v584
        %586 = vrot.lane.b32.xlu0 %v585, 96
        %v587 = vpop.permute.xlu0 %586
        %v589 = vsel %vm524, %v582, 0
        %v592 = vsel %vm524, %v587, 0
        %594 = vmatpush.bf16.xpose.msra.mxu0 0
        %595 = vmatpush.bf16.xpose.msra.mxu0 0
        %596 = vmatpush.bf16.xpose.msra.mxu0 0
        %597 = vmatpush.bf16.xpose.msra.mxu0 0
        %598 = vmatpush.bf16.xpose.msra.mxu0 0
        %599 = vmatpush.bf16.xpose.msra.mxu0 0
        %600 = vmatpush.bf16.xpose.msra.mxu0 0
        %601 = vmatpush.bf16.xpose.msra.mxu0 %v592
        %602 = vmatmul.bf16.gmra.mxu0 %v589
        %v603 = vpop.f32.mrf.mxu0
        %v604 = vadd.f32 0.0, %v603
        %v605 = vpop.f32.mrf.mxu0
        %606 = vdwg.mxu0
        %v607 = vsel %vm544, %v604, -inf
        %608 = vmax.xlane.f32.xlu0 %v607
        %v609 = vpop.xlane.xlu0 %608
        %v610 = vsub.f32 %v604, %v609
        %v611 = vmul.f32 %v610, 1.442695
        %v612 = vpow.pop %v611
        %v613 = vsel %vm544, %v612, 0.0
        %614 = vadd.xlane.f32.xlu0 %v613
        %v615 = vpop.xlane.xlu0 %614
        %v616 = vpack.c.bf16 %v612, %v612
        %v618 = vunpack.c.l.b16 %v522
        %v619 = vpack.c.b16 %v618, %v618
        %620 = vrot.lane.b32.xlu0 %v619, 96
        %v621 = vpop.permute.xlu0 %620
        %v623 = vsel %vm544, %v616, 0
        %v626 = vsel %vm558, %v621, 0
        %628 = vmatpush.bf16.msra.mxu0 0
        %629 = vmatpush.bf16.msra.mxu0 0
        %630 = vmatpush.bf16.msra.mxu0 0
        %631 = vmatpush.bf16.msra.mxu0 0
        %632 = vmatpush.bf16.msra.mxu0 0
        %633 = vmatpush.bf16.msra.mxu0 0
        %634 = vmatpush.bf16.msra.mxu0 0
        %635 = vmatpush.bf16.msra.mxu0 %v626
        %636 = vmatmul.bf16.gmra.mxu0 %v623
        %v637 = vpop.f32.mrf.mxu0
        %v638 = vadd.f32 0.0, %v637
        %v639 = vpop.f32.mrf.mxu0
        %640 = vdwg.mxu0
        %v641 = vrcp.pop %v615
        %v642 = vmul.f32 %v638, %v641
        %v643 = vpack.c.bf16 %v642, %v642
        %644 = vrot.lane.b32.xlu0 %v580, 64
        %v645 = vpop.permute.xlu0 %644
        %646 = vrot.lane.b32.xlu0 %v585, 64
        %v647 = vpop.permute.xlu0 %646
        %v649 = vsel %vm524, %v645, 0
        %v652 = vsel %vm524, %v647, 0
        %654 = vmatpush.bf16.xpose.msra.mxu0 0
        %655 = vmatpush.bf16.xpose.msra.mxu0 0
        %656 = vmatpush.bf16.xpose.msra.mxu0 0
        %657 = vmatpush.bf16.xpose.msra.mxu0 0
        %658 = vmatpush.bf16.xpose.msra.mxu0 0
        %659 = vmatpush.bf16.xpose.msra.mxu0 0
        %660 = vmatpush.bf16.xpose.msra.mxu0 0
        %661 = vmatpush.bf16.xpose.msra.mxu0 %v652
        %662 = vmatmul.bf16.gmra.mxu0 %v649
        %v663 = vpop.f32.mrf.mxu0
        %v664 = vadd.f32 0.0, %v663
        %v665 = vpop.f32.mrf.mxu0
        %666 = vdwg.mxu0
        %v667 = vsel %vm544, %v664, -inf
        %668 = vmax.xlane.f32.xlu0 %v667
        %v669 = vpop.xlane.xlu0 %668
        %v670 = vsub.f32 %v664, %v669
        %v671 = vmul.f32 %v670, 1.442695
        %v672 = vpow.pop %v671
        %v673 = vsel %vm544, %v672, 0.0
        %674 = vadd.xlane.f32.xlu0 %v673
        %v675 = vpop.xlane.xlu0 %674
        %v676 = vpack.c.bf16 %v672, %v672
        %677 = vrot.lane.b32.xlu0 %v619, 64
        %v678 = vpop.permute.xlu0 %677
        %v680 = vsel %vm544, %v676, 0
        %v683 = vsel %vm558, %v678, 0
        %685 = vmatpush.bf16.msra.mxu0 0
        %686 = vmatpush.bf16.msra.mxu0 0
        %687 = vmatpush.bf16.msra.mxu0 0
        %688 = vmatpush.bf16.msra.mxu0 0
        %689 = vmatpush.bf16.msra.mxu0 0
        %690 = vmatpush.bf16.msra.mxu0 0
        %691 = vmatpush.bf16.msra.mxu0 0
        %692 = vmatpush.bf16.msra.mxu0 %v683
        %693 = vmatmul.bf16.gmra.mxu0 %v680
        %v694 = vpop.f32.mrf.mxu0
        %v695 = vadd.f32 0.0, %v694
        %v696 = vpop.f32.mrf.mxu0
        %697 = vdwg.mxu0
        %v698 = vrcp.pop %v675
        %v699 = vmul.f32 %v695, %v698
        %v700 = vpack.c.bf16 %v699, %v699
        %701 = vrot.lane.b32.xlu0 %v580, 32
        %v702 = vpop.permute.xlu0 %701
        %703 = vrot.lane.b32.xlu0 %v585, 32
        %v704 = vpop.permute.xlu0 %703
        %v706 = vsel %vm524, %v702, 0
        %v709 = vsel %vm524, %v704, 0
        %711 = vmatpush.bf16.xpose.msra.mxu0 0
        %712 = vmatpush.bf16.xpose.msra.mxu0 0
        %713 = vmatpush.bf16.xpose.msra.mxu0 0
        %714 = vmatpush.bf16.xpose.msra.mxu0 0
        %715 = vmatpush.bf16.xpose.msra.mxu0 0
        %716 = vmatpush.bf16.xpose.msra.mxu0 0
        %717 = vmatpush.bf16.xpose.msra.mxu0 0
        %718 = vmatpush.bf16.xpose.msra.mxu0 %v709
        %719 = vmatmul.bf16.gmra.mxu0 %v706
        %v720 = vpop.f32.mrf.mxu0
        %v721 = vadd.f32 0.0, %v720
        %v722 = vpop.f32.mrf.mxu0
        %723 = vdwg.mxu0
        %v724 = vsel %vm544, %v721, -inf
        %725 = vmax.xlane.f32.xlu0 %v724
        %v726 = vpop.xlane.xlu0 %725
        %v727 = vsub.f32 %v721, %v726
        %v728 = vmul.f32 %v727, 1.442695
        %v729 = vpow.pop %v728
        %v730 = vsel %vm544, %v729, 0.0
        %731 = vadd.xlane.f32.xlu0 %v730
        %v732 = vpop.xlane.xlu0 %731
        %v733 = vpack.c.bf16 %v729, %v729
        %734 = vrot.lane.b32.xlu0 %v619, 32
        %v735 = vpop.permute.xlu0 %734
        %v737 = vsel %vm544, %v733, 0
        %v740 = vsel %vm558, %v735, 0
        %742 = vmatpush.bf16.msra.mxu0 0
        %743 = vmatpush.bf16.msra.mxu0 0
        %744 = vmatpush.bf16.msra.mxu0 0
        %745 = vmatpush.bf16.msra.mxu0 0
        %746 = vmatpush.bf16.msra.mxu0 0
        %747 = vmatpush.bf16.msra.mxu0 0
        %748 = vmatpush.bf16.msra.mxu0 0
        %749 = vmatpush.bf16.msra.mxu0 %v740
        %750 = vmatmul.bf16.gmra.mxu0 %v737
        %v751 = vpop.f32.mrf.mxu0
        %v752 = vadd.f32 0.0, %v751
        %v753 = vpop.f32.mrf.mxu0
        %754 = vdwg.mxu0
        %v755 = vrcp.pop %v732
        %v756 = vmul.f32 %v752, %v755
        %v757 = vpack.c.bf16 %v756, %v756
        %v759 = vunpack.c.l.b16 %v643
        %v760 = vpack.c.b16 %v759, %v759
        %761 = vrot.lane.b32.xlu0 %v760, 32
        %v762 = vpop.permute.xlu0 %761
        %v764 = vunpack.c.l.b16 %v700
        %v765 = vpack.c.b16 %v764, %v764
        %766 = vrot.lane.b32.xlu0 %v765, 64
        %v767 = vpop.permute.xlu0 %766
        %v769 = vunpack.c.l.b16 %v757
        %v770 = vpack.c.b16 %v769, %v769
        %771 = vrot.lane.b32.xlu0 %v770, 96
        %v772 = vpop.permute.xlu0 %771
        %v775 = vsel %vm524, %v577, %v762
        %vm776 = vcmask 523264
        %v778 = vsel %vm776, %v775, %v767
        %vm779 = vcmask 785408
        %v781 = vsel %vm779, %v778, %v772
        %v783 = vsel %vm524, %v519, 0
        %v786 = vsel %vm524, %v521, 0
        %788 = vmatpush.bf16.xpose.msra.mxu0 0
        %789 = vmatpush.bf16.xpose.msra.mxu0 0
        %790 = vmatpush.bf16.xpose.msra.mxu0 0
        %791 = vmatpush.bf16.xpose.msra.mxu0 0
        %792 = vmatpush.bf16.xpose.msra.mxu0 0
        %793 = vmatpush.bf16.xpose.msra.mxu0 0
        %794 = vmatpush.bf16.xpose.msra.mxu0 0
        %795 = vmatpush.bf16.xpose.msra.mxu0 %v786
        %796 = vmatmul.bf16.gmra.mxu0 %v783
        %v797 = vpop.f32.mrf.mxu0
        %v798 = vadd.f32 0.0, %v797
        %v799 = vpop.f32.mrf.mxu0
        %800 = vdwg.mxu0
        %v801 = vsel %vm544, %v798, -inf
        %802 = vmax.xlane.f32.xlu0 %v801
        %v803 = vpop.xlane.xlu0 %802
        %v804 = vsub.f32 %v798, %v803
        %v805 = vmul.f32 %v804, 1.442695
        %v806 = vpow.pop %v805
        %v807 = vsel %vm544, %v806, 0.0
        %808 = vadd.xlane.f32.xlu0 %v807
        %v809 = vpop.xlane.xlu0 %808
        %v810 = vpack.c.bf16 %v806, %v806
        %v812 = vsel %vm544, %v810, 0
        %v815 = vsel %vm558, %v523, 0
        %817 = vmatpush.bf16.msra.mxu0 0
        %818 = vmatpush.bf16.msra.mxu0 0
        %819 = vmatpush.bf16.msra.mxu0 0
        %820 = vmatpush.bf16.msra.mxu0 0
        %821 = vmatpush.bf16.msra.mxu0 0
        %822 = vmatpush.bf16.msra.mxu0 0
        %823 = vmatpush.bf16.msra.mxu0 0
        %824 = vmatpush.bf16.msra.mxu0 %v815
        %825 = vmatmul.bf16.gmra.mxu0 %v812
        %v826 = vpop.f32.mrf.mxu0
        %v827 = vadd.f32 0.0, %v826
        %v828 = vpop.f32.mrf.mxu0
        %829 = vdwg.mxu0
        %v830 = vrcp.pop %v809
        %v831 = vmul.f32 %v827, %v830
        %v832 = vpack.c.bf16 %v831, %v831
        %v834 = vunpack.c.l.b16 %v519
        %v835 = vpack.c.b16 %v834, %v834
        %836 = vrot.lane.b32.xlu0 %v835, 96
        %v837 = vpop.permute.xlu0 %836
        %v839 = vunpack.c.l.b16 %v521
        %v840 = vpack.c.b16 %v839, %v839
        %841 = vrot.lane.b32.xlu0 %v840, 96
        %v842 = vpop.permute.xlu0 %841
        %v844 = vsel %vm524, %v837, 0
        %v847 = vsel %vm524, %v842, 0
        %849 = vmatpush.bf16.xpose.msra.mxu0 0
        %850 = vmatpush.bf16.xpose.msra.mxu0 0
        %851 = vmatpush.bf16.xpose.msra.mxu0 0
        %852 = vmatpush.bf16.xpose.msra.mxu0 0
        %853 = vmatpush.bf16.xpose.msra.mxu0 0
        %854 = vmatpush.bf16.xpose.msra.mxu0 0
        %855 = vmatpush.bf16.xpose.msra.mxu0 0
        %856 = vmatpush.bf16.xpose.msra.mxu0 %v847
        %857 = vmatmul.bf16.gmra.mxu0 %v844
        %v858 = vpop.f32.mrf.mxu0
        %v859 = vadd.f32 0.0, %v858
        %v860 = vpop.f32.mrf.mxu0
        %861 = vdwg.mxu0
        %v862 = vsel %vm544, %v859, -inf
        %863 = vmax.xlane.f32.xlu0 %v862
        %v864 = vpop.xlane.xlu0 %863
        %v865 = vsub.f32 %v859, %v864
        %v866 = vmul.f32 %v865, 1.442695
        %v867 = vpow.pop %v866
        %v868 = vsel %vm544, %v867, 0.0
        %869 = vadd.xlane.f32.xlu0 %v868
        %v870 = vpop.xlane.xlu0 %869
        %v871 = vpack.c.bf16 %v867, %v867
        %v873 = vunpack.c.l.b16 %v523
        %v874 = vpack.c.b16 %v873, %v873
        %875 = vrot.lane.b32.xlu0 %v874, 96
        %v876 = vpop.permute.xlu0 %875
        %v878 = vsel %vm544, %v871, 0
        %v881 = vsel %vm558, %v876, 0
        %883 = vmatpush.bf16.msra.mxu0 0
        %884 = vmatpush.bf16.msra.mxu0 0
        %885 = vmatpush.bf16.msra.mxu0 0
        %886 = vmatpush.bf16.msra.mxu0 0
        %887 = vmatpush.bf16.msra.mxu0 0
        %888 = vmatpush.bf16.msra.mxu0 0
        %889 = vmatpush.bf16.msra.mxu0 0
        %890 = vmatpush.bf16.msra.mxu0 %v881
        %891 = vmatmul.bf16.gmra.mxu0 %v878
        %v892 = vpop.f32.mrf.mxu0
        %v893 = vadd.f32 0.0, %v892
        %v894 = vpop.f32.mrf.mxu0
        %895 = vdwg.mxu0
        %v896 = vrcp.pop %v870
        %v897 = vmul.f32 %v893, %v896
        %v898 = vpack.c.bf16 %v897, %v897
        %899 = vrot.lane.b32.xlu0 %v835, 64
        %v900 = vpop.permute.xlu0 %899
        %901 = vrot.lane.b32.xlu0 %v840, 64
        %v902 = vpop.permute.xlu0 %901
        %v904 = vsel %vm524, %v900, 0
        %v907 = vsel %vm524, %v902, 0
        %909 = vmatpush.bf16.xpose.msra.mxu0 0
        %910 = vmatpush.bf16.xpose.msra.mxu0 0
        %911 = vmatpush.bf16.xpose.msra.mxu0 0
        %912 = vmatpush.bf16.xpose.msra.mxu0 0
        %913 = vmatpush.bf16.xpose.msra.mxu0 0
        %914 = vmatpush.bf16.xpose.msra.mxu0 0
        %915 = vmatpush.bf16.xpose.msra.mxu0 0
        %916 = vmatpush.bf16.xpose.msra.mxu0 %v907
        %917 = vmatmul.bf16.gmra.mxu0 %v904
        %v918 = vpop.f32.mrf.mxu0
        %v919 = vadd.f32 0.0, %v918
        %v920 = vpop.f32.mrf.mxu0
        %921 = vdwg.mxu0
        %v922 = vsel %vm544, %v919, -inf
        %923 = vmax.xlane.f32.xlu0 %v922
        %v924 = vpop.xlane.xlu0 %923
        %v925 = vsub.f32 %v919, %v924
        %v926 = vmul.f32 %v925, 1.442695
        %v927 = vpow.pop %v926
        %v928 = vsel %vm544, %v927, 0.0
        %929 = vadd.xlane.f32.xlu0 %v928
        %v930 = vpop.xlane.xlu0 %929
        %v931 = vpack.c.bf16 %v927, %v927
        %932 = vrot.lane.b32.xlu0 %v874, 64
        %v933 = vpop.permute.xlu0 %932
        %v935 = vsel %vm544, %v931, 0
        %v938 = vsel %vm558, %v933, 0
        %940 = vmatpush.bf16.msra.mxu0 0
        %941 = vmatpush.bf16.msra.mxu0 0
        %942 = vmatpush.bf16.msra.mxu0 0
        %943 = vmatpush.bf16.msra.mxu0 0
        %944 = vmatpush.bf16.msra.mxu0 0
        %945 = vmatpush.bf16.msra.mxu0 0
        %946 = vmatpush.bf16.msra.mxu0 0
        %947 = vmatpush.bf16.msra.mxu0 %v938
        %948 = vmatmul.bf16.gmra.mxu0 %v935
        %v949 = vpop.f32.mrf.mxu0
        %v950 = vadd.f32 0.0, %v949
        %v951 = vpop.f32.mrf.mxu0
        %952 = vdwg.mxu0
        %v953 = vrcp.pop %v930
        %v954 = vmul.f32 %v950, %v953
        %v955 = vpack.c.bf16 %v954, %v954
        %956 = vrot.lane.b32.xlu0 %v835, 32
        %v957 = vpop.permute.xlu0 %956
        %958 = vrot.lane.b32.xlu0 %v840, 32
        %v959 = vpop.permute.xlu0 %958
        %v961 = vsel %vm524, %v957, 0
        %v964 = vsel %vm524, %v959, 0
        %966 = vmatpush.bf16.xpose.msra.mxu0 0
        %967 = vmatpush.bf16.xpose.msra.mxu0 0
        %968 = vmatpush.bf16.xpose.msra.mxu0 0
        %969 = vmatpush.bf16.xpose.msra.mxu0 0
        %970 = vmatpush.bf16.xpose.msra.mxu0 0
        %971 = vmatpush.bf16.xpose.msra.mxu0 0
        %972 = vmatpush.bf16.xpose.msra.mxu0 0
        %973 = vmatpush.bf16.xpose.msra.mxu0 %v964
        %974 = vmatmul.bf16.gmra.mxu0 %v961
        %v975 = vpop.f32.mrf.mxu0
        %v976 = vadd.f32 0.0, %v975
        %v977 = vpop.f32.mrf.mxu0
        %978 = vdwg.mxu0
        %v979 = vsel %vm544, %v976, -inf
        %980 = vmax.xlane.f32.xlu0 %v979
        %v981 = vpop.xlane.xlu0 %980
        %v982 = vsub.f32 %v976, %v981
        %v983 = vmul.f32 %v982, 1.442695
        %v984 = vpow.pop %v983
        %v985 = vsel %vm544, %v984, 0.0
        %986 = vadd.xlane.f32.xlu0 %v985
        %v987 = vpop.xlane.xlu0 %986
        %v988 = vpack.c.bf16 %v984, %v984
        %989 = vrot.lane.b32.xlu0 %v874, 32
        %v990 = vpop.permute.xlu0 %989
        %v992 = vsel %vm544, %v988, 0
        %v995 = vsel %vm558, %v990, 0
        %997 = vmatpush.bf16.msra.mxu0 0
        %998 = vmatpush.bf16.msra.mxu0 0
        %999 = vmatpush.bf16.msra.mxu0 0
        %1000 = vmatpush.bf16.msra.mxu0 0
        %1001 = vmatpush.bf16.msra.mxu0 0
        %1002 = vmatpush.bf16.msra.mxu0 0
        %1003 = vmatpush.bf16.msra.mxu0 0
        %1004 = vmatpush.bf16.msra.mxu0 %v995
        %1005 = vmatmul.bf16.gmra.mxu0 %v992
        %v1006 = vpop.f32.mrf.mxu0
        %v1007 = vadd.f32 0.0, %v1006
        %v1008 = vpop.f32.mrf.mxu0
        %1009 = vdwg.mxu0
        %v1010 = vrcp.pop %v987
        %v1011 = vmul.f32 %v1007, %v1010
        %v1012 = vpack.c.bf16 %v1011, %v1011
        %v1014 = vunpack.c.l.b16 %v898
        %v1015 = vpack.c.b16 %v1014, %v1014
        %1016 = vrot.lane.b32.xlu0 %v1015, 32
        %v1017 = vpop.permute.xlu0 %1016
        %v1019 = vunpack.c.l.b16 %v955
        %v1020 = vpack.c.b16 %v1019, %v1019
        %1021 = vrot.lane.b32.xlu0 %v1020, 64
        %v1022 = vpop.permute.xlu0 %1021
        %v1024 = vunpack.c.l.b16 %v1012
        %v1025 = vpack.c.b16 %v1024, %v1024
        %1026 = vrot.lane.b32.xlu0 %v1025, 96
        %v1027 = vpop.permute.xlu0 %1026
        %v1030 = vsel %vm524, %v832, %v1017
        %v1032 = vsel %vm776, %v1030, %v1022
        %v1034 = vsel %vm779, %v1032, %v1027
        %v1036 = vrot.slane %v1034, 4
        %v1038 = vsel %vm558, %v781, %v1036
        %v1040 = vld [vmem:[%s4] sm:$0xf]
        %v1041 = vld [vmem:[%s4 + $0x4] sm:$0xf]
        %v1042 = vld [vmem:[%s4 + $0x8] sm:$0xf]
        %v1043 = vld [vmem:[%s4 + $0xc] sm:$0xf]
        %v1044 = vld [vmem:[%s4 + $0x10] sm:$0xf]
        %v1045 = vld [vmem:[%s4 + $0x14] sm:$0xf]
        %v1046 = vld [vmem:[%s4 + $0x18] sm:$0xf]
        %v1047 = vld [vmem:[%s4 + $0x1c] sm:$0xf]
        %v1048 = vld [vmem:[%s4 + $0x20] sm:$0xf]
        %v1049 = vld [vmem:[%s4 + $0x24] sm:$0xf]
        %v1050 = vld [vmem:[%s4 + $0x28] sm:$0xf]
        %v1051 = vld [vmem:[%s4 + $0x2c] sm:$0xf]
        %v1052 = vld [vmem:[%s4 + $0x30] sm:$0xf]
        %v1053 = vld [vmem:[%s4 + $0x34] sm:$0xf]
        %v1054 = vld [vmem:[%s4 + $0x38] sm:$0xf]
        %v1055 = vld [vmem:[%s4 + $0x3c] sm:$0xf]
        %v1056 = vld [vmem:[%s5] sm:$0x1]
        %v1058 = vperm.slane %v1056, 0
        %v1076 = vunpack.c.l.b16 %v1040
        %v1077 = vunpack.c.l.b16 %v1041
        %v1078 = vunpack.c.l.b16 %v1042
        %v1079 = vunpack.c.l.b16 %v1043
        %v1080 = vunpack.c.l.b16 %v1044
        %v1081 = vunpack.c.l.b16 %v1045
        %v1082 = vunpack.c.l.b16 %v1046
        %v1083 = vunpack.c.l.b16 %v1047
        %v1084 = vunpack.c.l.b16 %v1048
        %v1085 = vunpack.c.l.b16 %v1049
        %v1086 = vunpack.c.l.b16 %v1050
        %v1087 = vunpack.c.l.b16 %v1051
        %v1088 = vunpack.c.l.b16 %v1052
        %v1089 = vunpack.c.l.b16 %v1053
        %v1090 = vunpack.c.l.b16 %v1054
        %v1091 = vunpack.c.l.b16 %v1055
        %v1092 = vpack.c.b16 %v1077, %v1076
        %v1093 = vpack.c.b16 %v1079, %v1078
        %v1094 = vpack.c.b16 %v1081, %v1080
        %v1095 = vpack.c.b16 %v1083, %v1082
        %v1096 = vpack.c.b16 %v1085, %v1084
        %v1097 = vpack.c.b16 %v1087, %v1086
        %v1098 = vpack.c.b16 %v1089, %v1088
        %v1099 = vpack.c.b16 %v1091, %v1090
        %1108 = vmatpush.bf16.msra.mxu0 %v1099
        %1109 = vmatpush.bf16.msra.mxu0 %v1098
        %1110 = vmatpush.bf16.msra.mxu0 %v1097
        %1111 = vmatpush.bf16.msra.mxu0 %v1096
        %1112 = vmatpush.bf16.msra.mxu0 %v1095
        %1113 = vmatpush.bf16.msra.mxu0 %v1094
        %1114 = vmatpush.bf16.msra.mxu0 %v1093
        %1115 = vmatpush.bf16.msra.mxu0 %v1092
        %1116 = vmatmul.bf16.gmra.mxu0 %v1038
        %v1117 = vpop.f32.mrf.mxu0
        %v1118 = vadd.f32 %v1058, %v1117
        %v1119 = vpop.f32.mrf.mxu0
        %v1120 = vadd.f32 %v1058, %v1119
        %1121 = vdwg.mxu0
        %1122 = vst [vmem:[%s245] sm:$0xff] %v1118
        %1123 = vst [vmem:[%s245 + $0x8] sm:$0xff] %v1120
        %s1124 = sand.u32 %s159, 1
        %s1125 = scalar_lea.sflag [#allocation3], %s1124
        %s1126 = sand.u32 %s159, 1
        %s1127 = smul.addr %s1126, 16
        %s1128 = scalar_lea.vmem [#allocation2], %s1127
        // Predicated region
        $region45: #{attention.1} parent=43 // pred_check
          %p1129 = pneg %p169
        $region46: #{attention.1} parent=43 // pred_check_branch
          %1131 = sbr.rel (%p1129) target = $region48
        $region47: #{attention.1} parent=43 // pred_region
          %s1132 = smul.u32 2, %s20
          %1134 = vsyncadd %s1125, 0
          %s1135 = smul.addr %s1132, 8
          %s1136 = scalar_lea.hbm %s6, %s1135
          %s1137 = sshll.u32 %s1128, 4
          %s1138 = int_to_ptr.vmem [resolvable:$true] %s1137
          %s1139 = sshll.u32 %s1136, 4
          %s1140 = int_to_ptr.hbm [resolvable:$true] %s1139
          %1145 = dma.vmem_to_hbm [thread:$0]  %s1138, 256, %s1140, %s1125, 128, 128, 8
        $region48: #{attention.1} parent=43 // pred_fallthru
          _
      $region44: #{attention.1} parent=5 // pred_fallthru
        _
      %p1146 = scmp.le.s32.totalorder 2, %s15
      // Predicated region
      $region49: #{attention.1} parent=5 // pred_check
        %p1147 = pneg %p1146
      $region50: #{attention.1} parent=5 // pred_check_branch
        %1149 = sbr.rel (%p1147) target = $region52
      $region51: #{attention.1} parent=5 // pred_region
        %s1150 = ssub.s32 %s15, 2
        // Predicated region
        $region53: #{attention.1} parent=51 // pred_check
          %p1151 = pneg %p175
        $region54: #{attention.1} parent=51 // pred_check_branch
          %1153 = sbr.rel (%p1151) target = $region56
        $region55: #{attention.1} parent=51 // pred_region
          %s1154 = sand.u32 %s160, 1
          %s1155 = scalar_lea.sflag [#allocation3], %s1154
          %s1156 = sand.u32 %s160, 1
          %s1157 = smul.addr %s1156, 16
          %s1158 = scalar_lea.vmem [#allocation2], %s1157
          %1160 = dma.done %s1155, 256
        $region56: #{attention.1} parent=51 // pred_fallthru
          _
      $region52: #{attention.1} parent=5 // pred_fallthru
        _
    $region6: #{attention.1} parent=1 // loop_footer
      %s19 = sadd.s32 1, %s15
    $region7: #{attention.1} parent=1 // loop_footer_branch
      %14 = sbr.rel target = $region3
    $region8: #{attention.1} parent=1 // loop_exit
      _
    %1161 = vsyncpa [#allocation3], 1
    %s1162 = scalar_lea.sflag [#allocation3], 1
    %1163 = vsyncpa %s1162, 1

</llo_original>
